<compile_context>
chip_gen: v5e
topology: v5e:2x2
jax: 0.10.0
libtpu: 0.0.40
codegen_flags: <defaults>
</compile_context>

<pallas_src>
import numpy as np
import jax
import jax.numpy as jnp
from jax.experimental import pallas as pl
from jax.experimental.pallas import tpu as pltpu


# ----------------------------------------------------------------------------
# shape helpers (mirror the torch module)
# ----------------------------------------------------------------------------
def conv_out(h_in, padding, kernel_size, stride):
    return int((h_in + 2.0 * padding - (kernel_size - 1.0) - 1.0) / stride + 1.0)


def _round_up(x, m):
    return ((x + m - 1) // m) * m


# ----------------------------------------------------------------------------
# host-side parameter prep: ConvTranspose1d -> block-Toeplitz matmul weight
# ----------------------------------------------------------------------------
def _conv_transpose_toeplitz(w, lin):
    """w: torch ConvTranspose1d weight (Cin, Cout, k); returns (Cin*Lin, Cout*Lout).

    T[i*Lin + s, o*Lout + (s + j)] = w[i, o, j]   (stride 1, padding 0)
    so that   y_flat = x_flat @ T   reproduces
    y[o, t] = sum_{i,j} x[i, t - j] * w[i, o, j].
    """
    w = np.asarray(w, np.float32)
    cin, cout, k = w.shape
    lout = lin + k - 1
    T = np.zeros((cin, lin, cout, lout), np.float32)
    for s in range(lin):
        T[:, s, :, s:s + k] = w
    return T.reshape(cin * lin, cout * lout)


def prepare_params(pt, *, output_shape, depth, kernel, embed_size):
    """pt: torch-layout params. Returns kernel-layout params (fused + lane-padded)."""
    c_out, L = output_shape
    d, k = depth, kernel
    c1 = conv_out(L, 0, k, 1)
    c2 = conv_out(c1, 0, k, 1)
    c3 = conv_out(c2, 0, k, 1)
    P = 4 * d * c3
    d3 = c_out * L
    d3_pad = _round_up(d3, 128)

    t1 = _conv_transpose_toeplitz(pt["w1"], c3)                       # (P, 2d*c2)
    b1 = np.repeat(np.asarray(pt["b1"], np.float32), c2)[None, :]
    t2 = _conv_transpose_toeplitz(pt["w2"], c2)                       # (2d*c2, d*c1)
    b2 = np.repeat(np.asarray(pt["b2"], np.float32), c1)[None, :]
    t3 = _conv_transpose_toeplitz(pt["w3"], c1)                       # (d*c1, c*L)
    b3 = np.repeat(np.asarray(pt["b3"], np.float32), L)[None, :]

    # lane-pad the final-layer columns to a multiple of 128 -> unmasked stores
    t3p = np.zeros((t3.shape[0], d3_pad), np.float32)
    t3p[:, :d3] = t3
    b3p = np.zeros((1, d3_pad), np.float32)
    b3p[:, :d3] = b3

    if embed_size != P:
        # torch uses nn.Linear; fuse it into conv-1 (no nonlinearity between them)
        wl = np.asarray(pt["wl"], np.float32)                         # (P, E) torch layout
        bl = np.asarray(pt["bl"], np.float32)
        w01 = wl.T @ t1                                               # (E, 2d*c2)
        b01 = bl[None, :] @ t1 + b1                                   # (1, 2d*c2)
    else:
        # nn.Identity(): first layer is just conv-1
        w01, b01 = t1, b1

    return {
        "w01": jnp.asarray(w01), "b01": jnp.asarray(b01),
        "t2": jnp.asarray(t2), "b2": jnp.asarray(b2),
        "t3": jnp.asarray(t3p), "b3": jnp.asarray(b3p),
    }


# ----------------------------------------------------------------------------
# Pallas kernel
# ----------------------------------------------------------------------------
def _elu(x):
    # ELU with alpha = 1 (nn.ELU default); clamp before exp so the untaken
    # branch cannot overflow.
    return jnp.where(x > 0, x, jnp.exp(jnp.minimum(x, 0.0)) - 1.0)


def fused_decoder_kernel(x_ref, w01_ref, b01_ref, t2_ref, b2_ref,
                         t3_ref, b3_ref, o_ref):
    # one grid step == one batch tile; all weights stay resident in VMEM
    h = _elu(jnp.dot(x_ref[...], w01_ref[...],
                     preferred_element_type=jnp.float32) + b01_ref[...])     # (tn, 2d*c2)
    h = _elu(jnp.dot(h, t2_ref[...],
                     preferred_element_type=jnp.float32) + b2_ref[...])      # (tn, d*c1)
    o_ref[...] = jnp.dot(h, t3_ref[...],
                         preferred_element_type=jnp.float32) + b3_ref[...]   # (tn, d3_pad)


# ----------------------------------------------------------------------------
# wrapper (== ObsDecoder.forward, returning the Normal mean)
# ----------------------------------------------------------------------------
def obs_decoder_forward(x, params, *, output_shape, depth, kernel, batch_tile=1024):
    c_out, L = output_shape
    d, k = depth, kernel
    c1 = conv_out(L, 0, k, 1)
    c2 = conv_out(c1, 0, k, 1)
    c3 = conv_out(c2, 0, k, 1)
    d1 = 2 * d * c2                 # layer-1 flattened width
    d2 = d * c1                     # layer-2 flattened width
    d3 = c_out * L                  # true output width (channel-major -> NCW reshape)
    d3_pad = params["t3"].shape[1]  # lane-padded output width (multiple of 128)

    batch_shape = x.shape[:-1]
    E = x.shape[-1]                 # == 4*d*c3 when the torch linear is Identity
    N = int(np.prod(batch_shape))
    x2 = x.reshape(N, E).astype(jnp.float32)

    # --- batch tiling: sublane-aligned, "parallel" grid axis ----------------
    tn = min(batch_tile, max(8, _round_up(N, 8)))
    if N >= 16:
        # keep >= 2 grid steps so v7x's two TensorCores both get work
        tn = min(tn, max(8, _round_up((N + 1) // 2, 8)))
    n_pad = _round_up(N, tn)
    if n_pad != N:                  # only pay the pad round trip when needed
        x2 = jnp.pad(x2, ((0, n_pad - N), (0, 0)))
    grid = (n_pad // tn,)

    in_specs = [
        pl.BlockSpec((tn, E), lambda i: (i, 0)),
        # weight blocks: constant index map -> resident across the grid
        # TODO(synk): for large depth/L, switch these to pipeline_mode=pl.Buffered(1)
        # or K-tile the Toeplitz matmuls to respect v7x's 64 MiB VMEM.
        pl.BlockSpec((E, d1), lambda i: (0, 0)),
        pl.BlockSpec((1, d1), lambda i: (0, 0)),
        pl.BlockSpec((d1, d2), lambda i: (0, 0)),
        pl.BlockSpec((1, d2), lambda i: (0, 0)),
        pl.BlockSpec((d2, d3_pad), lambda i: (0, 0)),
        pl.BlockSpec((1, d3_pad), lambda i: (0, 0)),
    ]

    # VMEM budget (f32 bytes); raise the scoped limit only when it would not fit.
    weight_bytes = 4 * (E * d1 + d1 + d1 * d2 + d2 + d2 * d3_pad + d3_pad)
    block_bytes = 4 * tn * (E + d3_pad)
    inter_bytes = 4 * tn * (d1 + d2)
    est = 2 * weight_bytes + 2 * block_bytes + inter_bytes   # 2x for double-buffering
    compiler_kwargs = dict(dimension_semantics=("parallel",))
    if est > (12 << 20):
        compiler_kwargs["vmem_limit_bytes"] = min(64 << 20, int(est * 1.5))

    out_flat = pl.pallas_call(
        fused_decoder_kernel,
        out_shape=jax.ShapeDtypeStruct((n_pad, d3_pad), jnp.float32),
        grid=grid,
        in_specs=in_specs,
        out_specs=pl.BlockSpec((tn, d3_pad), lambda i: (i, 0)),
        compiler_params=pltpu.CompilerParams(**compiler_kwargs),
    )(x2, params["w01"], params["b01"], params["t2"], params["b2"],
      params["t3"], params["b3"])

    mean = out_flat[:N, :d3].reshape(*batch_shape, c_out, L)
    # TODO(synk): td.Independent(td.Normal(mean, 1), 2) distribution wrapper has
    # no Pallas equivalent; the kernel returns the Normal mean.
    return mean


# ----------------------------------------------------------------------------
# pure-JAX reference (PyTorch NCW semantics) for validation
# ----------------------------------------------------------------------------
def _conv_transpose1d_ref(x, w, b):
    # x: (N, Cin, Lin), w: (Cin, Cout, k)  (torch ConvTranspose1d weight layout)
    n, cin, lin = x.shape
    _, cout, k = w.shape
    lout = lin + k - 1
    out = jnp.zeros((n, cout, lout), jnp.float32)
    for j in range(k):
        out = out.at[:, :, j:j + lin].add(
            jnp.einsum("nil,io->nol", x, w[:, :, j]))
    return out + b[None, :, None]


def ref_forward(x, pt, *, output_shape, depth, kernel):
    c_out, L = output_shape
    d, k = depth, kernel
    c3 = conv_out(conv_out(conv_out(L, 0, k, 1), 0, k, 1), 0, k, 1)
    batch_shape = x.shape[:-1]
    N = int(np.prod(batch_shape))
    h = x.reshape(N, x.shape[-1]) @ pt["wl"].T + pt["bl"]
    h = h.reshape(N, 4 * d, c3)
    h = jax.nn.elu(_conv_transpose1d_ref(h, pt["w1"], pt["b1"]))
    h = jax.nn.elu(_conv_transpose1d_ref(h, pt["w2"], pt["b2"]))
    h = _conv_transpose1d_ref(h, pt["w3"], pt["b3"])
    return h.reshape(*batch_shape, c_out, L)


# ----------------------------------------------------------------------------
if __name__ == "__main__":
    # small shapes consistent with the module
    output_shape = (3, 16)          # (c, L)
    depth, kernel = 8, 3            # info['depth'], info['kernel']; activation=ELU
    embed_size = 32
    batch_shape = (2, 4)            # e.g. (seq, batch)

    c_out, L = output_shape
    d, k = depth, kernel
    c3 = conv_out(conv_out(conv_out(L, 0, k, 1), 0, k, 1), 0, k, 1)
    P = 4 * d * c3                  # prod(conv_shape) = 320 != embed_size -> Linear

    key = jax.random.PRNGKey(0)
    ks = jax.random.split(key, 9)
    s = 0.1
    # torch-layout parameters (deterministic synthetic init)
    pt = {
        "wl": s * jax.random.normal(ks[0], (P, embed_size), jnp.float32),    # (out, in)
        "bl": s * jax.random.normal(ks[1], (P,), jnp.float32),
        "w1": s * jax.random.normal(ks[2], (4 * d, 2 * d, k), jnp.float32),  # (Cin,Cout,k)
        "b1": s * jax.random.normal(ks[3], (2 * d,), jnp.float32),
        "w2": s * jax.random.normal(ks[4], (2 * d, d, k), jnp.float32),
        "b2": s * jax.random.normal(ks[5], (d,), jnp.float32),
        "w3": s * jax.random.normal(ks[6], (d, c_out, k), jnp.float32),
        "b3": s * jax.random.normal(ks[7], (c_out,), jnp.float32),
    }
    params = prepare_params(pt, output_shape=output_shape, depth=depth,
                            kernel=kernel, embed_size=embed_size)

    x = jax.random.normal(ks[8], (*batch_shape, embed_size), jnp.float32)

    mean = obs_decoder_forward(x, params, output_shape=output_shape,
                               depth=depth, kernel=kernel)
    mean = jax.block_until_ready(mean)

    mean_ref = ref_forward(x, pt, output_shape=output_shape,
                           depth=depth, kernel=kernel)

    assert mean.shape == (*batch_shape, c_out, L), mean.shape
    np.testing.assert_allclose(np.asarray(mean), np.asarray(mean_ref),
                               rtol=2e-5, atol=2e-5)
    print("KERNEL_OK")
</pallas_src>

<mosaic_0001>
module attributes {stable_mosaic.version = 11 : i64} {
  func.func @fused_decoder_kernel(%arg0: i32, %arg1: memref<8x32xf32, #tpu.memory_space<vmem>>, %arg2: memref<32x192xf32, #tpu.memory_space<vmem>>, %arg3: memref<1x192xf32, #tpu.memory_space<vmem>>, %arg4: memref<192x112xf32, #tpu.memory_space<vmem>>, %arg5: memref<1x112xf32, #tpu.memory_space<vmem>>, %arg6: memref<112x128xf32, #tpu.memory_space<vmem>>, %arg7: memref<1x128xf32, #tpu.memory_space<vmem>>, %arg8: memref<8x128xf32, #tpu.memory_space<vmem>>) attributes {dimension_semantics = [#tpu.dimension_semantics<parallel>], iteration_bounds = array<i64: 1>, scalar_prefetch = 0 : i64, scratch_operands = 0 : i64, tpu.core_type = #tpu.core_type<tc>, window_params = [{transform_indices = @transform_0, window_bounds = array<i64: 8, 32>}, {pipeline_mode = #tpu.pipeline_mode<synchronous>, transform_indices = @transform_1, window_bounds = array<i64: 32, 192>}, {pipeline_mode = #tpu.pipeline_mode<synchronous>, transform_indices = @transform_2, window_bounds = array<i64: 1, 192>}, {pipeline_mode = #tpu.pipeline_mode<synchronous>, transform_indices = @transform_3, window_bounds = array<i64: 192, 112>}, {pipeline_mode = #tpu.pipeline_mode<synchronous>, transform_indices = @transform_4, window_bounds = array<i64: 1, 112>}, {pipeline_mode = #tpu.pipeline_mode<synchronous>, transform_indices = @transform_5, window_bounds = array<i64: 112, 128>}, {pipeline_mode = #tpu.pipeline_mode<synchronous>, transform_indices = @transform_6, window_bounds = array<i64: 1, 128>}, {transform_indices = @transform_7, window_bounds = array<i64: 8, 128>}]} {
    %c0 = arith.constant 0 : index
    %c0_0 = arith.constant 0 : index
    %0 = vector.load %arg1[%c0, %c0_0] : memref<8x32xf32, #tpu.memory_space<vmem>>, vector<8x32xf32>
    %c0_1 = arith.constant 0 : index
    %c0_2 = arith.constant 0 : index
    %1 = vector.load %arg2[%c0_1, %c0_2] : memref<32x192xf32, #tpu.memory_space<vmem>>, vector<32x192xf32>
    %cst = arith.constant dense<0.000000e+00> : vector<8x192xf32>
    %2 = tpu.matmul %0, %1, %cst {dimension_numbers = #tpu.dot_dimension_numbers<[1], [0], [0], [1], [0, 0, 1, 1], [], []>} : vector<8x32xf32>, vector<32x192xf32>, vector<8x192xf32> -> vector<8x192xf32>
    %c0_3 = arith.constant 0 : index
    %c0_4 = arith.constant 0 : index
    %3 = vector.load %arg3[%c0_3, %c0_4] : memref<1x192xf32, #tpu.memory_space<vmem>>, vector<1x192xf32>
    %4 = vector.broadcast %3 : vector<1x192xf32> to vector<8x192xf32>
    %5 = arith.addf %2, %4 : vector<8x192xf32>
    %cst_5 = arith.constant 0.000000e+00 : f32
    %6 = vector.broadcast %cst_5 : f32 to vector<8x192xf32>
    %7 = arith.cmpf ogt, %5, %6 : vector<8x192xf32>
    %cst_6 = arith.constant 0.000000e+00 : f32
    %8 = vector.broadcast %cst_6 : f32 to vector<8x192xf32>
    %9 = arith.minimumf %5, %8 : vector<8x192xf32>
    %10 = math.exp %9 : vector<8x192xf32>
    %cst_7 = arith.constant 1.000000e+00 : f32
    %11 = vector.broadcast %cst_7 : f32 to vector<8x192xf32>
    %12 = arith.subf %10, %11 : vector<8x192xf32>
    %13 = arith.select %7, %5, %12 : vector<8x192xi1>, vector<8x192xf32>
    %c0_8 = arith.constant 0 : index
    %c0_9 = arith.constant 0 : index
    %14 = vector.load %arg4[%c0_8, %c0_9] : memref<192x112xf32, #tpu.memory_space<vmem>>, vector<192x112xf32>
    %cst_10 = arith.constant dense<0.000000e+00> : vector<8x112xf32>
    %15 = tpu.matmul %13, %14, %cst_10 {dimension_numbers = #tpu.dot_dimension_numbers<[1], [0], [0], [1], [0, 0, 1, 1], [], []>} : vector<8x192xf32>, vector<192x112xf32>, vector<8x112xf32> -> vector<8x112xf32>
    %c0_11 = arith.constant 0 : index
    %c0_12 = arith.constant 0 : index
    %16 = vector.load %arg5[%c0_11, %c0_12] : memref<1x112xf32, #tpu.memory_space<vmem>>, vector<1x112xf32>
    %17 = vector.broadcast %16 : vector<1x112xf32> to vector<8x112xf32>
    %18 = arith.addf %15, %17 : vector<8x112xf32>
    %cst_13 = arith.constant 0.000000e+00 : f32
    %19 = vector.broadcast %cst_13 : f32 to vector<8x112xf32>
    %20 = arith.cmpf ogt, %18, %19 : vector<8x112xf32>
    %cst_14 = arith.constant 0.000000e+00 : f32
    %21 = vector.broadcast %cst_14 : f32 to vector<8x112xf32>
    %22 = arith.minimumf %18, %21 : vector<8x112xf32>
    %23 = math.exp %22 : vector<8x112xf32>
    %cst_15 = arith.constant 1.000000e+00 : f32
    %24 = vector.broadcast %cst_15 : f32 to vector<8x112xf32>
    %25 = arith.subf %23, %24 : vector<8x112xf32>
    %26 = arith.select %20, %18, %25 : vector<8x112xi1>, vector<8x112xf32>
    %c0_16 = arith.constant 0 : index
    %c0_17 = arith.constant 0 : index
    %27 = vector.load %arg6[%c0_16, %c0_17] : memref<112x128xf32, #tpu.memory_space<vmem>>, vector<112x128xf32>
    %cst_18 = arith.constant dense<0.000000e+00> : vector<8x128xf32>
    %28 = tpu.matmul %26, %27, %cst_18 {dimension_numbers = #tpu.dot_dimension_numbers<[1], [0], [0], [1], [0, 0, 1, 1], [], []>} : vector<8x112xf32>, vector<112x128xf32>, vector<8x128xf32> -> vector<8x128xf32>
    %c0_19 = arith.constant 0 : index
    %c0_20 = arith.constant 0 : index
    %29 = vector.load %arg7[%c0_19, %c0_20] : memref<1x128xf32, #tpu.memory_space<vmem>>, vector<1x128xf32>
    %30 = vector.broadcast %29 : vector<1x128xf32> to vector<8x128xf32>
    %31 = arith.addf %28, %30 : vector<8x128xf32>
    %c0_21 = arith.constant 0 : index
    %c0_22 = arith.constant 0 : index
    %32 = vector.load %arg8[%c0_21, %c0_22] : memref<8x128xf32, #tpu.memory_space<vmem>>, vector<8x128xf32>
    tpu.vector_store %arg8[%c0_21, %c0_22], %31 {strides = array<i32>} : memref<8x128xf32, #tpu.memory_space<vmem>>, vector<8x128xf32>,
    return
  }
  func.func @transform_0(%arg0: i32) -> (i32, i32) {
    %c0_i32 = arith.constant 0 : i32
    %c0_i32_0 = arith.constant 0 : i32
    return %arg0, %c0_i32 : i32, i32
  }
  func.func @transform_1(%arg0: i32) -> (i32, i32) {
    %c0_i32 = arith.constant 0 : i32
    %c0_i32_0 = arith.constant 0 : i32
    %c0_i32_1 = arith.constant 0 : i32
    return %c0_i32, %c0_i32_0 : i32, i32
  }
  func.func @transform_2(%arg0: i32) -> (i32, i32) {
    %c0_i32 = arith.constant 0 : i32
    %c0_i32_0 = arith.constant 0 : i32
    %c0_i32_1 = arith.constant 0 : i32
    return %c0_i32, %c0_i32_0 : i32, i32
  }
  func.func @transform_3(%arg0: i32) -> (i32, i32) {
    %c0_i32 = arith.constant 0 : i32
    %c0_i32_0 = arith.constant 0 : i32
    %c0_i32_1 = arith.constant 0 : i32
    return %c0_i32, %c0_i32_0 : i32, i32
  }
  func.func @transform_4(%arg0: i32) -> (i32, i32) {
    %c0_i32 = arith.constant 0 : i32
    %c0_i32_0 = arith.constant 0 : i32
    %c0_i32_1 = arith.constant 0 : i32
    return %c0_i32, %c0_i32_0 : i32, i32
  }
  func.func @transform_5(%arg0: i32) -> (i32, i32) {
    %c0_i32 = arith.constant 0 : i32
    %c0_i32_0 = arith.constant 0 : i32
    %c0_i32_1 = arith.constant 0 : i32
    return %c0_i32, %c0_i32_0 : i32, i32
  }
  func.func @transform_6(%arg0: i32) -> (i32, i32) {
    %c0_i32 = arith.constant 0 : i32
    %c0_i32_0 = arith.constant 0 : i32
    %c0_i32_1 = arith.constant 0 : i32
    return %c0_i32, %c0_i32_0 : i32, i32
  }
  func.func @transform_7(%arg0: i32) -> (i32, i32) {
    %c0_i32 = arith.constant 0 : i32
    %c0_i32_0 = arith.constant 0 : i32
    return %arg0, %c0_i32 : i32, i32
  }
}

</mosaic_0001>

<llo_original>
// kernel: tpu_custom_call.1
$region0: #{tpu_custom_call.1}
  #allocation0 [shape = 'u32[]', space=smem, size = 0x4, offset = 0x4, fixed_abs, tag = 'smem constant byte address 0x4 - core index']
  #allocation1 [shape = 'u32[72,128]{1,0:T(1,128)}', space=vmem, size = 0x9000, scoped, tag = 'internal scratch']
  %s0 = inlined_call_operand.hbm [shape: f32[8,32], index: 0, kind: input, shape index: {}]
  %s1 = inlined_call_operand.hbm [shape: f32[32,192], index: 1, kind: input, shape index: {}]
  %s2 = inlined_call_operand.hbm [shape: f32[1,192], index: 2, kind: input, shape index: {}]
  %s3 = inlined_call_operand.hbm [shape: f32[192,112], index: 3, kind: input, shape index: {}]
  %s4 = inlined_call_operand.vmem [shape: f32[1,112], index: 4, kind: input, shape index: {}]
  %s5 = inlined_call_operand.hbm [shape: f32[112,128], index: 5, kind: input, shape index: {}]
  %s6 = inlined_call_operand.vmem [shape: f32[1,128], index: 6, kind: input, shape index: {}]
  %s7 = inlined_call_operand.hbm [shape: f32[8,128], index: 7, kind: output, shape index: {}]
  %s8 = sld [smem:[#allocation0]]
  $region58: #{tpu_custom_call.1} parent=0
    _
  %s10 = ssub.s32 1, %s8
  %s11 = scalar_select 0, %s10, %s8
  $region1: #{tpu_custom_call.1} parent=0
    #allocation2 [shape = 'u8[4096]{0}', space=vmem, size = 0x1000, scoped, tag = 'input window, operand 0, single buffered']
    #allocation3 [shape = 's32[1]{0}', space=sflag, size = 0x4, scoped, tag = 'scoped memory for tpu_custom_call.1']
    #allocation4 [shape = 's32[1]{0}', space=sflag, size = 0x4, scoped, tag = 'scoped memory for tpu_custom_call.1']
    #allocation5 [shape = 'u8[32768]{0}', space=vmem, size = 0x8000, scoped, tag = 'input window, operand 1, single buffered']
    #allocation6 [shape = 's32[1]{0}', space=sflag, size = 0x4, scoped, tag = 'scoped memory for tpu_custom_call.1']
    #allocation7 [shape = 'u8[1024]{0}', space=vmem, size = 0x400, scoped, tag = 'input window, operand 2, single buffered']
    #allocation8 [shape = 'u8[98304]{0}', space=vmem, size = 0x18000, scoped, tag = 'input window, operand 3, single buffered']
    #allocation9 [shape = 's32[1]{0}', space=sflag, size = 0x4, scoped, tag = 'scoped memory for tpu_custom_call.1']
    #allocation10 [shape = 'u8[57344]{0}', space=vmem, size = 0xe000, scoped, tag = 'input window, operand 5, single buffered']
    #allocation11 [shape = 'u8[4096]{0}', space=vmem, size = 0x1000, scoped, tag = 'output window, operand 0, single buffered']
    %12 = vsyncpa [#allocation3], 0
    %13 = vsyncpa [#allocation6], 0
    %14 = vsyncpa [#allocation9], 0
    %15 = vsyncpa [#allocation4], 0
    // Predicated region
    $region2: #{tpu_custom_call.1} parent=1 // pred_check
      _
    $region3: #{tpu_custom_call.1} parent=1 // pred_check_branch
      %17 = sbr.rel (0) target = $region5
    $region4: #{tpu_custom_call.1} parent=1 // pred_region
      %19 = vsyncadd [#allocation3], 0
      %s21 = sshll.u32 %s0, 4
      %s22 = int_to_ptr.hbm [resolvable:$true] %s21
      %s23 = sshll.u32 [#allocation2], 4
      %s24 = int_to_ptr.vmem [resolvable:$true] %s23
      %26 = dma.hbm_to_vmem [thread:$0]  %s22, 128, %s24, [#allocation3]
    $region5: #{tpu_custom_call.1} parent=1 // pred_fallthru
      _
    // Predicated region
    $region6: #{tpu_custom_call.1} parent=1 // pred_check
      _
    $region7: #{tpu_custom_call.1} parent=1 // pred_check_branch
      %28 = sbr.rel (0) target = $region9
    $region8: #{tpu_custom_call.1} parent=1 // pred_region
      %30 = vsyncadd [#allocation6], 0
      %s31 = sshll.u32 %s1, 4
      %s32 = int_to_ptr.hbm [resolvable:$true] %s31
      %s33 = sshll.u32 [#allocation5], 4
      %s34 = int_to_ptr.vmem [resolvable:$true] %s33
      %39 = dma.hbm_to_vmem [thread:$0]  %s32, 1024, %s34, [#allocation6], 256, 256, 16
    $region9: #{tpu_custom_call.1} parent=1 // pred_fallthru
      _
    // Predicated region
    $region10: #{tpu_custom_call.1} parent=1 // pred_check
      _
    $region11: #{tpu_custom_call.1} parent=1 // pred_check_branch
      %41 = sbr.rel (0) target = $region13
    $region12: #{tpu_custom_call.1} parent=1 // pred_region
      %43 = vsyncadd [#allocation6], 0
      %s45 = sshll.u32 %s2, 4
      %s46 = int_to_ptr.hbm [resolvable:$true] %s45
      %s47 = sshll.u32 [#allocation7], 4
      %s48 = int_to_ptr.vmem [resolvable:$true] %s47
      %50 = dma.hbm_to_vmem [thread:$0]  %s46, 32, %s48, [#allocation6]
    $region13: #{tpu_custom_call.1} parent=1 // pred_fallthru
      _
    // Predicated region
    $region14: #{tpu_custom_call.1} parent=1 // pred_check
      _
    $region15: #{tpu_custom_call.1} parent=1 // pred_check_branch
      %52 = sbr.rel (0) target = $region17
    $region16: #{tpu_custom_call.1} parent=1 // pred_region
      %54 = vsyncadd [#allocation9], 0
      %s55 = sshll.u32 %s3, 4
      %s56 = int_to_ptr.hbm [resolvable:$true] %s55
      %s57 = sshll.u32 [#allocation8], 4
      %s58 = int_to_ptr.vmem [resolvable:$true] %s57
      %63 = dma.hbm_to_vmem [thread:$0]  %s56, 3072, %s58, [#allocation9], 128, 128, 8
    $region17: #{tpu_custom_call.1} parent=1 // pred_fallthru
      _
    // Predicated region
    $region18: #{tpu_custom_call.1} parent=1 // pred_check
      _
    $region19: #{tpu_custom_call.1} parent=1 // pred_check_branch
      %65 = sbr.rel (0) target = $region21
    $region20: #{tpu_custom_call.1} parent=1 // pred_region
      _
    $region21: #{tpu_custom_call.1} parent=1 // pred_fallthru
      _
    // Predicated region
    $region22: #{tpu_custom_call.1} parent=1 // pred_check
      _
    $region23: #{tpu_custom_call.1} parent=1 // pred_check_branch
      %67 = sbr.rel (0) target = $region25
    $region24: #{tpu_custom_call.1} parent=1 // pred_region
      %69 = vsyncadd [#allocation9], 0
      %s70 = sshll.u32 %s5, 4
      %s71 = int_to_ptr.hbm [resolvable:$true] %s70
      %s72 = sshll.u32 [#allocation10], 4
      %s73 = int_to_ptr.vmem [resolvable:$true] %s72
      %78 = dma.hbm_to_vmem [thread:$0]  %s71, 1792, %s73, [#allocation9], 128, 128, 8
    $region25: #{tpu_custom_call.1} parent=1 // pred_fallthru
      _
    // Predicated region
    $region26: #{tpu_custom_call.1} parent=1 // pred_check
      _
    $region27: #{tpu_custom_call.1} parent=1 // pred_check_branch
      %80 = sbr.rel (0) target = $region29
    $region28: #{tpu_custom_call.1} parent=1 // pred_region
      _
    $region29: #{tpu_custom_call.1} parent=1 // pred_fallthru
      _
    // Predicated region
    $region30: #{tpu_custom_call.1} parent=1 // pred_check
      _
    $region31: #{tpu_custom_call.1} parent=1 // pred_check_branch
      %82 = sbr.rel (0) target = $region33
    $region32: #{tpu_custom_call.1} parent=1 // pred_region
      %84 = dma.done [#allocation3], 128
    $region33: #{tpu_custom_call.1} parent=1 // pred_fallthru
      _
    // Predicated region
    $region34: #{tpu_custom_call.1} parent=1 // pred_check
      _
    $region35: #{tpu_custom_call.1} parent=1 // pred_check_branch
      %86 = sbr.rel (0) target = $region37
    $region36: #{tpu_custom_call.1} parent=1 // pred_region
      %88 = dma.done [#allocation6], 1024
    $region37: #{tpu_custom_call.1} parent=1 // pred_fallthru
      _
    // Predicated region
    $region38: #{tpu_custom_call.1} parent=1 // pred_check
      _
    $region39: #{tpu_custom_call.1} parent=1 // pred_check_branch
      %90 = sbr.rel (0) target = $region41
    $region40: #{tpu_custom_call.1} parent=1 // pred_region
      %92 = dma.done [#allocation6], 32
    $region41: #{tpu_custom_call.1} parent=1 // pred_fallthru
      _
    // Predicated region
    $region42: #{tpu_custom_call.1} parent=1 // pred_check
      _
    $region43: #{tpu_custom_call.1} parent=1 // pred_check_branch
      %94 = sbr.rel (0) target = $region45
    $region44: #{tpu_custom_call.1} parent=1 // pred_region
      %96 = dma.done [#allocation9], 3072
    $region45: #{tpu_custom_call.1} parent=1 // pred_fallthru
      _
    // Predicated region
    $region46: #{tpu_custom_call.1} parent=1 // pred_check
      _
    $region47: #{tpu_custom_call.1} parent=1 // pred_check_branch
      %98 = sbr.rel (0) target = $region49
    $region48: #{tpu_custom_call.1} parent=1 // pred_region
      %100 = dma.done [#allocation9], 1792
    $region49: #{tpu_custom_call.1} parent=1 // pred_fallthru
      _
    %v101 = vld [vmem:[#allocation2] sm:$0xff]
    %v102 = vld [vmem:[#allocation5] sm:$0xff]
    %v103 = vld [vmem:[#allocation5 + $0x8] sm:$0xff]
    %v104 = vld [vmem:[#allocation5 + $0x10] sm:$0xff]
    %v105 = vld [vmem:[#allocation5 + $0x18] sm:$0xff]
    %v106 = vld [vmem:[#allocation5 + $0x20] sm:$0xff]
    %v107 = vld [vmem:[#allocation5 + $0x28] sm:$0xff]
    %v108 = vld [vmem:[#allocation5 + $0x30] sm:$0xff]
    %v109 = vld [vmem:[#allocation5 + $0x38] sm:$0xff]
    %v110 = vld [vmem:[#allocation7] sm:$0x3]
    %v112 = vperm.slane %v110, 0
    %v113 = vperm.slane %v110, 1
    %vm116 = vcmask 261120
    %v118 = vsel %vm116, %v101, 0
    %120 = vmatpush.msra.mxu0 0.0
    %121 = vmatpush.msra.mxu0 0.0
    %122 = vmatpush.msra.mxu0 0.0
    %123 = vmatpush.msra.mxu0 0.0
    %124 = vmatpush.msra.mxu0 0.0
    %125 = vmatpush.msra.mxu0 0.0
    %126 = vmatpush.msra.mxu0 0.0
    %127 = vmatpush.msra.mxu0 0.0
    %128 = vmatpush.msra.mxu0 0.0
    %129 = vmatpush.msra.mxu0 0.0
    %130 = vmatpush.msra.mxu0 0.0
    %131 = vmatpush.msra.mxu0 0.0
    %132 = vmatpush.msra.mxu0 %v108
    %133 = vmatpush.msra.mxu0 %v106
    %134 = vmatpush.msra.mxu0 %v104
    %135 = vmatpush.msra.mxu0 %v102
    %136 = vmatmul.f32.gmra.mxu0 %v118
    %v137 = vpop.f32.mrf.mxu0
    %v138 = vadd.f32 %v112, %v137
    %139 = vdwg.mxu0
    %140 = vmatpush.msra.mxu0 0.0
    %141 = vmatpush.msra.mxu0 0.0
    %142 = vmatpush.msra.mxu0 0.0
    %143 = vmatpush.msra.mxu0 0.0
    %144 = vmatpush.msra.mxu0 0.0
    %145 = vmatpush.msra.mxu0 0.0
    %146 = vmatpush.msra.mxu0 0.0
    %147 = vmatpush.msra.mxu0 0.0
    %148 = vmatpush.msra.mxu0 0.0
    %149 = vmatpush.msra.mxu0 0.0
    %150 = vmatpush.msra.mxu0 0.0
    %151 = vmatpush.msra.mxu0 0.0
    %152 = vmatpush.msra.mxu0 %v109
    %153 = vmatpush.msra.mxu0 %v107
    %154 = vmatpush.msra.mxu0 %v105
    %155 = vmatpush.msra.mxu0 %v103
    %156 = vmatmul.f32.gmra.mxu0 %v118
    %v157 = vpop.f32.mrf.mxu0
    %v158 = vadd.f32 %v113, %v157
    %159 = vdwg.mxu0
    %vm160 = vcmp.gt.f32.partialorder %v138, 0.0
    %vm161 = vcmp.gt.f32.partialorder %v158, 0.0
    %v162 = vmin.f32 %v138, 0.0
    %v163 = vmin.f32 %v158, 0.0
    %v164 = vmul.f32 %v162, 1.442695
    %v165 = vpow.pop %v164
    %v166 = vmul.f32 %v163, 1.442695
    %v167 = vpow.pop %v166
    %v168 = vsub.f32 %v165, 1.0
    %v169 = vsub.f32 %v167, 1.0
    %v170 = vsel %vm160, %v138, %v168
    %v171 = vsel %vm161, %v158, %v169
    %v172 = vld [vmem:[#allocation8] sm:$0xff]
    %v173 = vld [vmem:[#allocation8 + $0x8] sm:$0xff]
    %v174 = vld [vmem:[#allocation8 + $0x10] sm:$0xff]
    %v175 = vld [vmem:[#allocation8 + $0x18] sm:$0xff]
    %v176 = vld [vmem:[#allocation8 + $0x20] sm:$0xff]
    %v177 = vld [vmem:[#allocation8 + $0x28] sm:$0xff]
    %v178 = vld [vmem:[#allocation8 + $0x30] sm:$0xff]
    %v179 = vld [vmem:[#allocation8 + $0x38] sm:$0xff]
    %v180 = vld [vmem:[#allocation8 + $0x40] sm:$0xff]
    %v181 = vld [vmem:[#allocation8 + $0x48] sm:$0xff]
    %v182 = vld [vmem:[#allocation8 + $0x50] sm:$0xff]
    %v183 = vld [vmem:[#allocation8 + $0x58] sm:$0xff]
    %v184 = vld [vmem:[#allocation8 + $0x60] sm:$0xff]
    %v185 = vld [vmem:[#allocation8 + $0x68] sm:$0xff]
    %v186 = vld [vmem:[#allocation8 + $0x70] sm:$0xff]
    %v187 = vld [vmem:[#allocation8 + $0x78] sm:$0xff]
    %v188 = vld [vmem:[#allocation8 + $0x80] sm:$0xff]
    %v189 = vld [vmem:[#allocation8 + $0x88] sm:$0xff]
    %v190 = vld [vmem:[#allocation8 + $0x90] sm:$0xff]
    %v191 = vld [vmem:[#allocation8 + $0x98] sm:$0xff]
    %v192 = vld [vmem:[#allocation8 + $0xa0] sm:$0xff]
    %v193 = vld [vmem:[#allocation8 + $0xa8] sm:$0xff]
    %v194 = vld [vmem:[#allocation8 + $0xb0] sm:$0xff]
    %v195 = vld [vmem:[#allocation8 + $0xb8] sm:$0xff]
    %v196 = vld [vmem:[%s4] sm:$0x1]
    %v198 = vperm.slane %v196, 0
    %vm200 = vcmask 523264
    %v202 = vsel %vm200, %v171, 0
    %204 = vmatpush.msra.mxu0 %v187
    %205 = vmatpush.msra.mxu0 %v186
    %206 = vmatpush.msra.mxu0 %v185
    %207 = vmatpush.msra.mxu0 %v184
    %208 = vmatpush.msra.mxu0 %v183
    %209 = vmatpush.msra.mxu0 %v182
    %210 = vmatpush.msra.mxu0 %v181
    %211 = vmatpush.msra.mxu0 %v180
    %212 = vmatpush.msra.mxu0 %v179
    %213 = vmatpush.msra.mxu0 %v178
    %214 = vmatpush.msra.mxu0 %v177
    %215 = vmatpush.msra.mxu0 %v176
    %216 = vmatpush.msra.mxu0 %v175
    %217 = vmatpush.msra.mxu0 %v174
    %218 = vmatpush.msra.mxu0 %v173
    %219 = vmatpush.msra.mxu0 %v172
    %220 = vmatmul.f32.gmra.mxu0 %v170
    %v221 = vpop.f32.mrf.mxu0
    %v222 = vadd.f32 %v198, %v221
    %223 = vdwg.mxu0
    %224 = vmatpush.msra.mxu0 0.0
    %225 = vmatpush.msra.mxu0 0.0
    %226 = vmatpush.msra.mxu0 0.0
    %227 = vmatpush.msra.mxu0 0.0
    %228 = vmatpush.msra.mxu0 0.0
    %229 = vmatpush.msra.mxu0 0.0
    %230 = vmatpush.msra.mxu0 0.0
    %231 = vmatpush.msra.mxu0 0.0
    %232 = vmatpush.msra.mxu0 %v195
    %233 = vmatpush.msra.mxu0 %v194
    %234 = vmatpush.msra.mxu0 %v193
    %235 = vmatpush.msra.mxu0 %v192
    %236 = vmatpush.msra.mxu0 %v191
    %237 = vmatpush.msra.mxu0 %v190
    %238 = vmatpush.msra.mxu0 %v189
    %239 = vmatpush.msra.mxu0 %v188
    %240 = vmatmul.f32.gmra.mxu0 %v202
    %v241 = vpop.f32.mrf.mxu0
    %v242 = vadd.f32 %v222, %v241
    %243 = vdwg.mxu0
    %vm244 = vcmp.gt.f32.partialorder %v242, 0.0
    %v245 = vmin.f32 %v242, 0.0
    %v246 = vmul.f32 %v245, 1.442695
    %v247 = vpow.pop %v246
    %v248 = vsub.f32 %v247, 1.0
    %v249 = vsel %vm244, %v242, %v248
    %v250 = vld [vmem:[#allocation10] sm:$0xff]
    %v251 = vld [vmem:[#allocation10 + $0x8] sm:$0xff]
    %v252 = vld [vmem:[#allocation10 + $0x10] sm:$0xff]
    %v253 = vld [vmem:[#allocation10 + $0x18] sm:$0xff]
    %v254 = vld [vmem:[#allocation10 + $0x20] sm:$0xff]
    %v255 = vld [vmem:[#allocation10 + $0x28] sm:$0xff]
    %v256 = vld [vmem:[#allocation10 + $0x30] sm:$0xff]
    %v257 = vld [vmem:[#allocation10 + $0x38] sm:$0xff]
    %v258 = vld [vmem:[#allocation10 + $0x40] sm:$0xff]
    %v259 = vld [vmem:[#allocation10 + $0x48] sm:$0xff]
    %v260 = vld [vmem:[#allocation10 + $0x50] sm:$0xff]
    %v261 = vld [vmem:[#allocation10 + $0x58] sm:$0xff]
    %v262 = vld [vmem:[#allocation10 + $0x60] sm:$0xff]
    %v263 = vld [vmem:[#allocation10 + $0x68] sm:$0xff]
    %v264 = vld [vmem:[%s6] sm:$0x1]
    %v266 = vperm.slane %v264, 0
    %vm268 = vcmask 916480
    %v270 = vsel %vm268, %v249, 0
    %272 = vmatpush.msra.mxu0 0.0
    %273 = vmatpush.msra.mxu0 0.0
    %274 = vmatpush.msra.mxu0 %v263
    %275 = vmatpush.msra.mxu0 %v262
    %276 = vmatpush.msra.mxu0 %v261
    %277 = vmatpush.msra.mxu0 %v260
    %278 = vmatpush.msra.mxu0 %v259
    %279 = vmatpush.msra.mxu0 %v258
    %280 = vmatpush.msra.mxu0 %v257
    %281 = vmatpush.msra.mxu0 %v256
    %282 = vmatpush.msra.mxu0 %v255
    %283 = vmatpush.msra.mxu0 %v254
    %284 = vmatpush.msra.mxu0 %v253
    %285 = vmatpush.msra.mxu0 %v252
    %286 = vmatpush.msra.mxu0 %v251
    %287 = vmatpush.msra.mxu0 %v250
    %288 = vmatmul.f32.gmra.mxu0 %v270
    %v289 = vpop.f32.mrf.mxu0
    %v290 = vadd.f32 %v266, %v289
    %291 = vdwg.mxu0
    %292 = vst [vmem:[#allocation11] sm:$0xff] %v290
    // Predicated region
    $region50: #{tpu_custom_call.1} parent=1 // pred_check
      _
    $region51: #{tpu_custom_call.1} parent=1 // pred_check_branch
      %294 = sbr.rel (0) target = $region53
    $region52: #{tpu_custom_call.1} parent=1 // pred_region
      %296 = vsyncadd [#allocation4], 0
      %s298 = sshll.u32 [#allocation11], 4
      %s299 = int_to_ptr.vmem [resolvable:$true] %s298
      %s300 = sshll.u32 %s7, 4
      %s301 = int_to_ptr.hbm [resolvable:$true] %s300
      %303 = dma.vmem_to_hbm [thread:$0]  %s299, 128, %s301, [#allocation4]
    $region53: #{tpu_custom_call.1} parent=1 // pred_fallthru
      _
    // Predicated region
    $region54: #{tpu_custom_call.1} parent=1 // pred_check
      _
    $region55: #{tpu_custom_call.1} parent=1 // pred_check_branch
      %305 = sbr.rel (0) target = $region57
    $region56: #{tpu_custom_call.1} parent=1 // pred_region
      %307 = dma.done [#allocation4], 128
    $region57: #{tpu_custom_call.1} parent=1 // pred_fallthru
      _
    %308 = vsyncpa [#allocation3], 1
    %309 = vsyncpa [#allocation6], 1
    %310 = vsyncpa [#allocation9], 1
    %311 = vsyncpa [#allocation4], 1

</llo_original>
